<compile_context>
chip_gen: v7x
topology: tpu7x:2x2x1
jax: 0.10.0
libtpu: 0.0.40
codegen_flags: <defaults>
</compile_context>

<pallas_src>
import functools

import jax
import jax.numpy as jnp
from jax import lax
from jax.experimental import pallas as pl
from jax.experimental.pallas import tpu as pltpu

_LANES = 128
_VMEM_LIMIT = 48 * 1024 * 1024  # explicit budget: fits v5e/v6e/v7x


def _round_up(x, m):
    return (x + m - 1) // m * m


# ---------------------------------------------------------------------------
# Kernel 1: per (batch, N-tile)
#   - U = x_tile @ Wd_s, V = x_tile @ Wv_s + shift   (BN scale folded into W)
#   - d[i, j] = -||x_i - x_j||^2 against ALL N points
#   - streaming top-k selection (k static, small) -> int32 neighbor indices
# ---------------------------------------------------------------------------
def _knn_project_kernel(k, xt_ref, xf_ref, wd_ref, wv_ref, shift_ref,
                        idx_ref, u_ref, v_ref):
    xt = xt_ref[0]                                                   # (TN, C)
    xf = xf_ref[0]                                                   # (N,  C)

    # Per-point projections (the 1x1 conv, decomposed + BN-scale folded).
    u_ref[0] = jnp.dot(xt, wd_ref[...], preferred_element_type=jnp.float32)
    v_ref[0] = (jnp.dot(xt, wv_ref[...], preferred_element_type=jnp.float32)
                + shift_ref[...])

    # Negative squared distance of every tile row to all N points.
    inner = lax.dot_general(xt, xf, (((1,), (1,)), ((), ())),
                            preferred_element_type=jnp.float32)      # (TN, N)
    sq_t = jnp.sum(xt * xt, axis=1, keepdims=True)                   # (TN, 1)
    sq_f = jnp.sum(xf * xf, axis=1, keepdims=True)                   # (N, 1)
    d = 2.0 * inner - sq_t - sq_f.reshape(1, -1)                     # (TN, N)

    # Streaming top-k: pick the max, record its column, mask it, repeat.
    tn, n = d.shape
    col = lax.broadcasted_iota(jnp.int32, (tn, n), 1)
    cols = []
    for _ in range(k):
        m = jnp.max(d, axis=1, keepdims=True)                        # (TN, 1)
        sel = jnp.min(jnp.where(d == m, col, n), axis=1, keepdims=True)  # lowest idx on ties
        cols.append(sel)
        d = jnp.where(col == sel, -jnp.inf, d)
    idx_ref[0] = jnp.concatenate(cols, axis=1)                       # (TN, k) int32


def knn_and_project(x_bnc, wd, wv, shift, k, tile_n):
    B, N, C = x_bnc.shape
    Cp = wd.shape[1]
    TN = tile_n
    kern = functools.partial(_knn_project_kernel, k)
    return pl.pallas_call(
        kern,
        out_shape=(jax.ShapeDtypeStruct((B, N, k), jnp.int32),
                   jax.ShapeDtypeStruct((B, N, Cp), jnp.float32),
                   jax.ShapeDtypeStruct((B, N, Cp), jnp.float32)),
        grid=(B, N // TN),
        in_specs=[
            pl.BlockSpec((1, TN, C), lambda b, n: (b, n, 0)),   # x row tile
            pl.BlockSpec((1, N, C), lambda b, n: (b, 0, 0)),    # x full (fetched once per b)
            pl.BlockSpec((C, Cp), lambda b, n: (0, 0)),         # Wd_s  (scale folded)
            pl.BlockSpec((C, Cp), lambda b, n: (0, 0)),         # Wc_s - Wd_s (scale folded)
            pl.BlockSpec((1, Cp), lambda b, n: (0, 0)),         # BN shift
        ],
        out_specs=[
            pl.BlockSpec((1, TN, k), lambda b, n: (b, n, 0)),
            pl.BlockSpec((1, TN, Cp), lambda b, n: (b, n, 0)),
            pl.BlockSpec((1, TN, Cp), lambda b, n: (b, n, 0)),
        ],
        compiler_params=pltpu.CompilerParams(
            dimension_semantics=("parallel", "parallel"),
            vmem_limit_bytes=_VMEM_LIMIT),
    )(x_bnc, x_bnc, wd, wv, shift)


# ---------------------------------------------------------------------------
# Kernel 2: per (batch, N-tile)
#   neighbor gather of U rows (indices in SMEM via scalar prefetch),
#   running max over k, + V, LeakyReLU(0.2).
#   LeakyReLU is monotonic, so  max_j leaky(U_j + V_i) == leaky(max_j U_j + V_i).
# ---------------------------------------------------------------------------
def _gather_max_kernel(k, n_total, tile_n, idx_ref, u_ref, v_ref, o_ref):
    b = pl.program_id(0)
    nt = pl.program_id(1)
    base = (b * n_total + nt * tile_n) * k

    def row(i, carry):
        off = base + i * k
        acc = u_ref[0, pl.ds(idx_ref[off], 1), :]                    # (1, Cp)
        for kk in range(1, k):                                       # k static, unrolled
            j = idx_ref[off + kk]
            acc = jnp.maximum(acc, u_ref[0, pl.ds(j, 1), :])
        t = acc + v_ref[0, pl.ds(i, 1), :]
        o_ref[0, pl.ds(i, 1), :] = jnp.where(t > 0, t, 0.2 * t)      # LeakyReLU(0.2)
        return carry

    lax.fori_loop(0, tile_n, row, 0)


def gather_combine_max(idx, u, v, k, tile_n):
    B, N, Cp = u.shape
    TN = tile_n
    idx_flat = idx.reshape(-1)                                       # 1-D -> cheap SMEM padding
    kern = functools.partial(_gather_max_kernel, k, N, TN)
    grid_spec = pltpu.PrefetchScalarGridSpec(
        num_scalar_prefetch=1,
        grid=(B, N // TN),
        in_specs=[
            pl.BlockSpec((1, N, Cp), lambda b, n, idx_s: (b, 0, 0)),   # U full (per batch)
            pl.BlockSpec((1, TN, Cp), lambda b, n, idx_s: (b, n, 0)),  # V tile
        ],
        out_specs=pl.BlockSpec((1, TN, Cp), lambda b, n, idx_s: (b, n, 0)),
    )
    return pl.pallas_call(
        kern,
        out_shape=jax.ShapeDtypeStruct((B, N, Cp), jnp.float32),
        grid_spec=grid_spec,
        compiler_params=pltpu.CompilerParams(
            dimension_semantics=("parallel", "parallel"),
            vmem_limit_bytes=_VMEM_LIMIT),
    )(idx_flat, u, v)


# ---------------------------------------------------------------------------
# Full EdgeConv forward (glue: transpose, tile-size pick, pad slice-off).
# ---------------------------------------------------------------------------
def edge_conv_forward(x, params, k, tile_n=256):
    B, C, N = x.shape
    x_bnc = jnp.transpose(x, (0, 2, 1)).astype(jnp.float32)          # (B, N, C)

    tn = min(tile_n, N)
    if N % tn != 0 or (tn % 8 != 0 and tn != N):
        tn = N

    idx, u, v = knn_and_project(x_bnc, params["wd"], params["wv"],
                                params["shift"], k, tn)              # Pallas kernel 1
    out_pad = gather_combine_max(idx, u, v, k, tn)                   # Pallas kernel 2
    out = out_pad[..., : params["cout"]]                             # drop lane padding
    return jnp.transpose(out, (0, 2, 1))                             # (B, Cout, N)


# ---------------------------------------------------------------------------
# Parameters: raw PyTorch-style (Conv2d weight + BatchNorm2d stats/affine)
# and the folded / padded form consumed by the kernels.
# ---------------------------------------------------------------------------
def init_params(key, in_channels, out_channels):
    k1, k2, k3, k4, k5 = jax.random.split(key, 5)
    c2 = in_channels * 2
    w = jax.random.normal(k1, (out_channels, c2), jnp.float32) / jnp.sqrt(float(c2))
    gamma = 1.0 + 0.1 * jax.random.normal(k2, (out_channels,), jnp.float32)
    beta = 0.1 * jax.random.normal(k3, (out_channels,), jnp.float32)
    running_mean = 0.1 * jax.random.normal(k4, (out_channels,), jnp.float32)
    running_var = jnp.abs(jax.random.normal(k5, (out_channels,), jnp.float32)) + 0.5
    return {"w": w, "gamma": gamma, "beta": beta,
            "running_mean": running_mean, "running_var": running_var, "eps": 1e-5}


def prepare_params(raw, in_channels, out_channels):
    C = in_channels
    scale = raw["gamma"] / jnp.sqrt(raw["running_var"] + raw["eps"])
    shift = raw["beta"] - raw["running_mean"] * scale
    w_t = jnp.transpose(raw["w"])                  # (2C, Cout): rows [:C]->Wd, [C:]->Wc
    wd = w_t[:C] * scale[None, :]                  # applied to neighbor x_j
    wv = (w_t[C:] - w_t[:C]) * scale[None, :]      # applied to center x_i
    cp = _round_up(out_channels, _LANES)           # lane-dense pipeline width
    pad = cp - out_channels
    return {"wd": jnp.pad(wd, ((0, 0), (0, pad))),
            "wv": jnp.pad(wv, ((0, 0), (0, pad))),
            "shift": jnp.pad(shift, (0, pad))[None, :],
            "cout": out_channels}


# ---------------------------------------------------------------------------
# Pure-JAX reference (original un-folded formulation) for a numerical check.
# ---------------------------------------------------------------------------
def reference_forward(x, raw, k):
    x_bnc = jnp.transpose(x, (0, 2, 1))
    sq = jnp.sum(x_bnc ** 2, axis=-1)
    d = 2.0 * jnp.einsum("bnc,bmc->bnm", x_bnc, x_bnc) - sq[:, :, None] - sq[:, None, :]
    _, idx = lax.top_k(d, k)
    gathered = jax.vmap(lambda xb, ib: xb[ib])(x_bnc, idx)           # (B, N, k, C)
    center = jnp.broadcast_to(x_bnc[:, :, None, :], gathered.shape)
    graph = jnp.concatenate([gathered - center, center], axis=-1)    # (B, N, k, 2C)
    y = jnp.einsum("bnkc,oc->bnko", graph, raw["w"])
    scale = raw["gamma"] / jnp.sqrt(raw["running_var"] + raw["eps"])
    shift = raw["beta"] - raw["running_mean"] * scale
    y = y * scale + shift
    y = jnp.where(y > 0, y, 0.2 * y)
    y = jnp.max(y, axis=2)                                           # (B, N, Cout)
    return jnp.transpose(y, (0, 2, 1))


if __name__ == "__main__":
    B, C_in, N = 2, 4, 16
    C_out, K = 32, 4

    key = jax.random.PRNGKey(0)
    kx, kp = jax.random.split(key)
    x = jax.random.normal(kx, (B, C_in, N), jnp.float32)             # (B, C, N) like PyTorch
    raw = init_params(kp, C_in, C_out)
    params = prepare_params(raw, C_in, C_out)

    out = edge_conv_forward(x, params, K, tile_n=8)                  # tile over N (grid (2, 2))
    out = jax.block_until_ready(out)

    ref = jax.block_until_ready(reference_forward(x, raw, K))
    assert out.shape == (B, C_out, N), out.shape
    assert jnp.allclose(out, ref, atol=1e-4, rtol=1e-4), float(jnp.max(jnp.abs(out - ref)))

    print("KERNEL_OK")
</pallas_src>

<mosaic_0001>
module attributes {stable_mosaic.version = 11 : i64} {
  func.func @_knn_project_kernel(%arg0: i32, %arg1: i32, %arg2: memref<1x8x4xf32, #tpu.memory_space<vmem>>, %arg3: memref<1x16x4xf32, #tpu.memory_space<vmem>>, %arg4: memref<4x128xf32, #tpu.memory_space<vmem>>, %arg5: memref<4x128xf32, #tpu.memory_space<vmem>>, %arg6: memref<1x128xf32, #tpu.memory_space<vmem>>, %arg7: memref<1x8x4xi32, #tpu.memory_space<vmem>>, %arg8: memref<1x8x128xf32, #tpu.memory_space<vmem>>, %arg9: memref<1x8x128xf32, #tpu.memory_space<vmem>>) attributes {dimension_semantics = [#tpu.dimension_semantics<parallel>, #tpu.dimension_semantics<parallel>], iteration_bounds = array<i64: 2, 2>, scalar_prefetch = 0 : i64, scratch_operands = 0 : i64, tpu.core_type = #tpu.core_type<tc>, window_params = [{transform_indices = @transform_0, window_bounds = array<i64: 1, 8, 4>}, {transform_indices = @transform_1, window_bounds = array<i64: 1, 16, 4>}, {pipeline_mode = #tpu.pipeline_mode<synchronous>, transform_indices = @transform_2, window_bounds = array<i64: 4, 128>}, {pipeline_mode = #tpu.pipeline_mode<synchronous>, transform_indices = @transform_3, window_bounds = array<i64: 4, 128>}, {pipeline_mode = #tpu.pipeline_mode<synchronous>, transform_indices = @transform_4, window_bounds = array<i64: 1, 128>}, {transform_indices = @transform_5, window_bounds = array<i64: 1, 8, 4>}, {transform_indices = @transform_6, window_bounds = array<i64: 1, 8, 128>}, {transform_indices = @transform_7, window_bounds = array<i64: 1, 8, 128>}]} {
    %c0 = arith.constant 0 : index
    %c0_0 = arith.constant 0 : index
    %c0_1 = arith.constant 0 : index
    %0 = vector.load %arg2[%c0, %c0_0, %c0_1] : memref<1x8x4xf32, #tpu.memory_space<vmem>>, vector<1x8x4xf32>
    %1 = vector.shape_cast %0 : vector<1x8x4xf32> to vector<8x4xf32>
    %c0_2 = arith.constant 0 : index
    %c0_3 = arith.constant 0 : index
    %c0_4 = arith.constant 0 : index
    %2 = vector.load %arg3[%c0_2, %c0_3, %c0_4] : memref<1x16x4xf32, #tpu.memory_space<vmem>>, vector<1x16x4xf32>
    %3 = vector.shape_cast %2 : vector<1x16x4xf32> to vector<16x4xf32>
    %c0_5 = arith.constant 0 : index
    %c0_6 = arith.constant 0 : index
    %4 = vector.load %arg4[%c0_5, %c0_6] : memref<4x128xf32, #tpu.memory_space<vmem>>, vector<4x128xf32>
    %cst = arith.constant dense<0.000000e+00> : vector<8x128xf32>
    %5 = tpu.matmul %1, %4, %cst {dimension_numbers = #tpu.dot_dimension_numbers<[1], [0], [0], [1], [0, 0, 1, 1], [], []>} : vector<8x4xf32>, vector<4x128xf32>, vector<8x128xf32> -> vector<8x128xf32>
    %c0_7 = arith.constant 0 : index
    %c0_8 = arith.constant 0 : index
    %c0_9 = arith.constant 0 : index
    %6 = vector.load %arg8[%c0_7, %c0_8, %c0_9] : memref<1x8x128xf32, #tpu.memory_space<vmem>>, vector<1x8x128xf32>
    %7 = vector.shape_cast %6 : vector<1x8x128xf32> to vector<8x128xf32>
    %8 = vector.shape_cast %5 : vector<8x128xf32> to vector<1x8x128xf32>
    tpu.vector_store %arg8[%c0_7, %c0_8, %c0_9], %8 {strides = array<i32>} : memref<1x8x128xf32, #tpu.memory_space<vmem>>, vector<1x8x128xf32>,
    %c0_10 = arith.constant 0 : index
    %c0_11 = arith.constant 0 : index
    %9 = vector.load %arg5[%c0_10, %c0_11] : memref<4x128xf32, #tpu.memory_space<vmem>>, vector<4x128xf32>
    %cst_12 = arith.constant dense<0.000000e+00> : vector<8x128xf32>
    %10 = tpu.matmul %1, %9, %cst_12 {dimension_numbers = #tpu.dot_dimension_numbers<[1], [0], [0], [1], [0, 0, 1, 1], [], []>} : vector<8x4xf32>, vector<4x128xf32>, vector<8x128xf32> -> vector<8x128xf32>
    %c0_13 = arith.constant 0 : index
    %c0_14 = arith.constant 0 : index
    %11 = vector.load %arg6[%c0_13, %c0_14] : memref<1x128xf32, #tpu.memory_space<vmem>>, vector<1x128xf32>
    %12 = vector.broadcast %11 : vector<1x128xf32> to vector<8x128xf32>
    %13 = arith.addf %10, %12 : vector<8x128xf32>
    %c0_15 = arith.constant 0 : index
    %c0_16 = arith.constant 0 : index
    %c0_17 = arith.constant 0 : index
    %14 = vector.load %arg9[%c0_15, %c0_16, %c0_17] : memref<1x8x128xf32, #tpu.memory_space<vmem>>, vector<1x8x128xf32>
    %15 = vector.shape_cast %14 : vector<1x8x128xf32> to vector<8x128xf32>
    %16 = vector.shape_cast %13 : vector<8x128xf32> to vector<1x8x128xf32>
    tpu.vector_store %arg9[%c0_15, %c0_16, %c0_17], %16 {strides = array<i32>} : memref<1x8x128xf32, #tpu.memory_space<vmem>>, vector<1x8x128xf32>,
    %cst_18 = arith.constant dense<0.000000e+00> : vector<8x16xf32>
    %17 = tpu.matmul %1, %3, %cst_18 {dimension_numbers = #tpu.dot_dimension_numbers<[1], [1], [0], [0], [0, 0, 1, 0], [], []>} : vector<8x4xf32>, vector<16x4xf32>, vector<8x16xf32> -> vector<8x16xf32>
    %18 = arith.mulf %1, %1 : vector<8x4xf32>
    %cst_19 = arith.constant dense<0.000000e+00> : vector<8xf32>
    %19 = vector.multi_reduction <add>, %18, %cst_19 [1] : vector<8x4xf32> to vector<8xf32>
    %20 = vector.shape_cast %19 : vector<8xf32> to vector<8x1xf32>
    %21 = arith.mulf %3, %3 : vector<16x4xf32>
    %cst_20 = arith.constant dense<0.000000e+00> : vector<16xf32>
    %22 = vector.multi_reduction <add>, %21, %cst_20 [1] : vector<16x4xf32> to vector<16xf32>
    %23 = vector.shape_cast %22 : vector<16xf32> to vector<16x1xf32>
    %cst_21 = arith.constant 2.000000e+00 : f32
    %24 = vector.broadcast %cst_21 : f32 to vector<8x16xf32>
    %25 = arith.mulf %24, %17 : vector<8x16xf32>
    %26 = vector.broadcast %20 : vector<8x1xf32> to vector<8x16xf32>
    %27 = arith.subf %25, %26 : vector<8x16xf32>
    %28 = vector.shape_cast %23 : vector<16x1xf32> to vector<1x16xf32>
    %29 = vector.broadcast %28 : vector<1x16xf32> to vector<8x16xf32>
    %30 = arith.subf %27, %29 : vector<8x16xf32>
    %31 = tpu.iota {dimensions = array<i32: 1>} : vector<8x16xi32>
    %cst_22 = arith.constant dense<0xFF800000> : vector<8xf32>
    %32 = vector.multi_reduction <maximumf>, %30, %cst_22 [1] : vector<8x16xf32> to vector<8xf32>
    %33 = vector.shape_cast %32 : vector<8xf32> to vector<8x1xf32>
    %34 = vector.broadcast %33 : vector<8x1xf32> to vector<8x16xf32>
    %35 = arith.cmpf oeq, %30, %34 : vector<8x16xf32>
    %c16_i32 = arith.constant 16 : i32
    %36 = vector.broadcast %c16_i32 : i32 to vector<8x16xi32>
    %37 = arith.select %35, %31, %36 : vector<8x16xi1>, vector<8x16xi32>
    %cst_23 = arith.constant dense<2147483647> : vector<8xi32>
    %38 = vector.multi_reduction <minsi>, %37, %cst_23 [1] : vector<8x16xi32> to vector<8xi32>
    %39 = vector.shape_cast %38 : vector<8xi32> to vector<8x1xi32>
    %40 = vector.broadcast %39 : vector<8x1xi32> to vector<8x16xi32>
    %41 = arith.cmpi eq, %31, %40 : vector<8x16xi32>
    %cst_24 = arith.constant 0xFF800000 : f32
    %42 = vector.broadcast %cst_24 : f32 to vector<8x16xf32>
    %43 = arith.select %41, %42, %30 : vector<8x16xi1>, vector<8x16xf32>
    %cst_25 = arith.constant dense<0xFF800000> : vector<8xf32>
    %44 = vector.multi_reduction <maximumf>, %43, %cst_25 [1] : vector<8x16xf32> to vector<8xf32>
    %45 = vector.shape_cast %44 : vector<8xf32> to vector<8x1xf32>
    %46 = vector.broadcast %45 : vector<8x1xf32> to vector<8x16xf32>
    %47 = arith.cmpf oeq, %43, %46 : vector<8x16xf32>
    %c16_i32_26 = arith.constant 16 : i32
    %48 = vector.broadcast %c16_i32_26 : i32 to vector<8x16xi32>
    %49 = arith.select %47, %31, %48 : vector<8x16xi1>, vector<8x16xi32>
    %cst_27 = arith.constant dense<2147483647> : vector<8xi32>
    %50 = vector.multi_reduction <minsi>, %49, %cst_27 [1] : vector<8x16xi32> to vector<8xi32>
    %51 = vector.shape_cast %50 : vector<8xi32> to vector<8x1xi32>
    %52 = vector.broadcast %51 : vector<8x1xi32> to vector<8x16xi32>
    %53 = arith.cmpi eq, %31, %52 : vector<8x16xi32>
    %cst_28 = arith.constant 0xFF800000 : f32
    %54 = vector.broadcast %cst_28 : f32 to vector<8x16xf32>
    %55 = arith.select %53, %54, %43 : vector<8x16xi1>, vector<8x16xf32>
    %cst_29 = arith.constant dense<0xFF800000> : vector<8xf32>
    %56 = vector.multi_reduction <maximumf>, %55, %cst_29 [1] : vector<8x16xf32> to vector<8xf32>
    %57 = vector.shape_cast %56 : vector<8xf32> to vector<8x1xf32>
    %58 = vector.broadcast %57 : vector<8x1xf32> to vector<8x16xf32>
    %59 = arith.cmpf oeq, %55, %58 : vector<8x16xf32>
    %c16_i32_30 = arith.constant 16 : i32
    %60 = vector.broadcast %c16_i32_30 : i32 to vector<8x16xi32>
    %61 = arith.select %59, %31, %60 : vector<8x16xi1>, vector<8x16xi32>
    %cst_31 = arith.constant dense<2147483647> : vector<8xi32>
    %62 = vector.multi_reduction <minsi>, %61, %cst_31 [1] : vector<8x16xi32> to vector<8xi32>
    %63 = vector.shape_cast %62 : vector<8xi32> to vector<8x1xi32>
    %64 = vector.broadcast %63 : vector<8x1xi32> to vector<8x16xi32>
    %65 = arith.cmpi eq, %31, %64 : vector<8x16xi32>
    %cst_32 = arith.constant 0xFF800000 : f32
    %66 = vector.broadcast %cst_32 : f32 to vector<8x16xf32>
    %67 = arith.select %65, %66, %55 : vector<8x16xi1>, vector<8x16xf32>
    %cst_33 = arith.constant dense<0xFF800000> : vector<8xf32>
    %68 = vector.multi_reduction <maximumf>, %67, %cst_33 [1] : vector<8x16xf32> to vector<8xf32>
    %69 = vector.shape_cast %68 : vector<8xf32> to vector<8x1xf32>
    %70 = vector.broadcast %69 : vector<8x1xf32> to vector<8x16xf32>
    %71 = arith.cmpf oeq, %67, %70 : vector<8x16xf32>
    %c16_i32_34 = arith.constant 16 : i32
    %72 = vector.broadcast %c16_i32_34 : i32 to vector<8x16xi32>
    %73 = arith.select %71, %31, %72 : vector<8x16xi1>, vector<8x16xi32>
    %cst_35 = arith.constant dense<2147483647> : vector<8xi32>
    %74 = vector.multi_reduction <minsi>, %73, %cst_35 [1] : vector<8x16xi32> to vector<8xi32>
    %75 = vector.shape_cast %74 : vector<8xi32> to vector<8x1xi32>
    %76 = tpu.concatenate %39, %51, %63, %75 in 1 : vector<8x1xi32>, vector<8x1xi32>, vector<8x1xi32>, vector<8x1xi32> -> vector<8x4xi32>
    %c0_36 = arith.constant 0 : index
    %c0_37 = arith.constant 0 : index
    %c0_38 = arith.constant 0 : index
    %77 = vector.load %arg7[%c0_36, %c0_37, %c0_38] : memref<1x8x4xi32, #tpu.memory_space<vmem>>, vector<1x8x4xi32>
    %78 = vector.shape_cast %77 : vector<1x8x4xi32> to vector<8x4xi32>
    %79 = vector.shape_cast %76 : vector<8x4xi32> to vector<1x8x4xi32>
    tpu.vector_store %arg7[%c0_36, %c0_37, %c0_38], %79 {strides = array<i32>} : memref<1x8x4xi32, #tpu.memory_space<vmem>>, vector<1x8x4xi32>,
    return
  }
  func.func @transform_0(%arg0: i32, %arg1: i32) -> (i32, i32, i32) {
    %c0_i32 = arith.constant 0 : i32
    %c0_i32_0 = arith.constant 0 : i32
    return %arg0, %arg1, %c0_i32 : i32, i32, i32
  }
  func.func @transform_1(%arg0: i32, %arg1: i32) -> (i32, i32, i32) {
    %c0_i32 = arith.constant 0 : i32
    %c0_i32_0 = arith.constant 0 : i32
    %c0_i32_1 = arith.constant 0 : i32
    return %arg0, %c0_i32, %c0_i32_0 : i32, i32, i32
  }
  func.func @transform_2(%arg0: i32, %arg1: i32) -> (i32, i32) {
    %c0_i32 = arith.constant 0 : i32
    %c0_i32_0 = arith.constant 0 : i32
    %c0_i32_1 = arith.constant 0 : i32
    return %c0_i32, %c0_i32_0 : i32, i32
  }
  func.func @transform_3(%arg0: i32, %arg1: i32) -> (i32, i32) {
    %c0_i32 = arith.constant 0 : i32
    %c0_i32_0 = arith.constant 0 : i32
    %c0_i32_1 = arith.constant 0 : i32
    return %c0_i32, %c0_i32_0 : i32, i32
  }
  func.func @transform_4(%arg0: i32, %arg1: i32) -> (i32, i32) {
    %c0_i32 = arith.constant 0 : i32
    %c0_i32_0 = arith.constant 0 : i32
    %c0_i32_1 = arith.constant 0 : i32
    return %c0_i32, %c0_i32_0 : i32, i32
  }
  func.func @transform_5(%arg0: i32, %arg1: i32) -> (i32, i32, i32) {
    %c0_i32 = arith.constant 0 : i32
    %c0_i32_0 = arith.constant 0 : i32
    return %arg0, %arg1, %c0_i32 : i32, i32, i32
  }
  func.func @transform_6(%arg0: i32, %arg1: i32) -> (i32, i32, i32) {
    %c0_i32 = arith.constant 0 : i32
    %c0_i32_0 = arith.constant 0 : i32
    return %arg0, %arg1, %c0_i32 : i32, i32, i32
  }
  func.func @transform_7(%arg0: i32, %arg1: i32) -> (i32, i32, i32) {
    %c0_i32 = arith.constant 0 : i32
    %c0_i32_0 = arith.constant 0 : i32
    return %arg0, %arg1, %c0_i32 : i32, i32, i32
  }
}

</mosaic_0001>

<llo_original>
// kernel: tpu_custom_call.1
$region0: #{tpu_custom_call.1}
  #allocation0 [shape = 'u32[]', space=smem, size = 0x4, offset = 0x4, fixed_abs, tag = 'smem constant byte address 0x4 - core index']
  #allocation1 [shape = 'u32[144,128]{1,0:T(1,128)}', space=vmem, size = 0x12000, scoped, tag = 'internal scratch']
  %s0 = inlined_call_operand.vmem [shape: f32[2,16,4], index: 0, kind: input, shape index: {}]
  %s1 = inlined_call_operand.vmem [shape: f32[2,16,4], index: 1, kind: input, shape index: {}]
  %s2 = inlined_call_operand.vmem [shape: f32[4,128], index: 2, kind: input, shape index: {}]
  %s3 = inlined_call_operand.vmem [shape: f32[4,128], index: 3, kind: input, shape index: {}]
  %s4 = inlined_call_operand.vmem [shape: f32[1,128], index: 4, kind: input, shape index: {}]
  %s5 = inlined_call_operand.vmem [shape: s32[2,16,4], index: 5, kind: output, shape index: {0}]
  %s6 = inlined_call_operand.hbm [shape: f32[2,16,128], index: 6, kind: output, shape index: {1}]
  %s7 = inlined_call_operand.hbm [shape: f32[2,16,128], index: 7, kind: output, shape index: {2}]
  %8 = xla_tuple %s5, %s6, %s7
  %s9 = sld [smem:[#allocation0]]
  $region69: #{tpu_custom_call.1} parent=0
    _
  %s11 = ssub.s32 1, %s9
  %s12 = scalar_select 0, %s11, %s9
  $region1: #{tpu_custom_call.1} parent=0
    #allocation2 [shape = 'u8[8192]{0}', space=vmem, size = 0x2000, scoped, tag = 'output window, operand 1']
    #allocation3 [shape = 's32[2]{0}', space=sflag, size = 0x8, scoped, tag = 'scoped memory for tpu_custom_call.1']
    #allocation4 [shape = 'u8[8192]{0}', space=vmem, size = 0x2000, scoped, tag = 'output window, operand 2']
    #allocation5 [shape = 's32[2]{0}', space=sflag, size = 0x8, scoped, tag = 'scoped memory for tpu_custom_call.1']
    %13 = vsyncpa [#allocation3], 0
    %s14 = scalar_lea.sflag [#allocation3], 1
    %15 = vsyncpa %s14, 0
    %16 = vsyncpa [#allocation5], 0
    %s17 = scalar_lea.sflag [#allocation5], 1
    %18 = vsyncpa %s17, 0
    loop: start=0, step=1, limit=6
    $region2: #{tpu_custom_call.1} parent=1 // loop_pre_header
      _
    $region3: #{tpu_custom_call.1} parent=1 // loop_header
      %s20 = sphi 0, %s24
      %p21 = scmp.ge.s32.totalorder %s20, 6
      %s27 = sphi 0, %s39
      %s28 = sphi 0, %s35
      %s29 = sphi 0, %s27
      %s30 = sphi 0, %s28
      %s31 = sphi 0, %s29
      %s32 = sphi 0, %s30
      %s44 = sphi 0, %s46
      %s47 = sphi 0, %s44
      %s48 = sphi 0, %s47
      %s64 = sphi 0, %s48
      %s70 = sphi 0, %s72
      %s73 = sphi 0, %s70
      %s74 = sphi 0, %s73
      %s90 = sphi 0, %s74
      %s94 = sphi 0, %s94
      %s96 = sphi 0, %s94
      %s97 = sphi 0, %s96
      %s111 = sphi 0, %s97
      %s115 = sphi 0, %s115
      %s117 = sphi 0, %s115
      %s118 = sphi 0, %s117
      %s132 = sphi 0, %s118
      %s136 = sphi 0, %s136
      %s138 = sphi 0, %s136
      %s139 = sphi 0, %s138
      %s153 = sphi 0, %s139
      %s161 = sphi 0, %s163
      %s164 = sphi 0, %s161
      %s165 = sphi 0, %s164
      %s181 = sphi 0, %s165
      %s189 = sphi 0, %s191
      %s192 = sphi 0, %s189
      %s193 = sphi 0, %s192
      %s209 = sphi 0, %s193
      %s217 = sphi 0, %s219
      %s220 = sphi 0, %s217
      %s221 = sphi 0, %s220
      %s237 = sphi 0, %s221
    $region4: #{tpu_custom_call.1} parent=1 // loop_header_branch
      %23 = sbr.rel (%p21) target = $region8
    $region5: #{tpu_custom_call.1} parent=1 // loop_body
      %s25 = ssub.s32 %s20, 1
      %s26 = ssub.s32 %s20, 2
      %s33 = sadd.s32 1, %s28
      %p34 = scmp.ge.s32.totalorder %s33, 2
      %s35 = scalar_select %p34, 0, %s33
      %s36 = sadd.s32 1, %s27
      %s37 = scalar_select %p34, %s36, %s27
      %p38 = scmp.ge.s32.totalorder %s37, 2
      %s39 = scalar_select %p38, 0, %s37
      %s40 = ssub.s32 %s27, %s39
      %s41 = ssub.s32 %s28, %s35
      %s42 = sor.u32 %s40, %s41
      %p43 = scmp.eq.s32.totalorder %s42, 0
      %s45 = sadd.s32 %s44, 1
      %s46 = scalar_select %p43, %s44, %s45
      %p49 = pneg %p43
      %p50 = scmp.eq.s32.totalorder %s20, 3
      %p51 = por %p49, %p50
      %p52 = scmp.ne.s32.totalorder %s44, %s47
      %p53 = scmp.eq.s32.totalorder %s20, 0
      %p54 = por %p52, %p53
      %p55 = scmp.ne.s32.totalorder %s44, %s47
      %p56 = scmp.eq.s32.totalorder %s25, 3
      %p57 = por %p55, %p56
      %p58 = scmp.ne.s32.totalorder %s47, %s48
      %p59 = scmp.eq.s32.totalorder %s25, 0
      %p60 = por %p58, %p59
      %p61 = scmp.ne.s32.totalorder %s47, %s48
      %p62 = scmp.eq.s32.totalorder %s26, 3
      %p63 = por %p61, %p62
      %p65 = scmp.ne.s32.totalorder %s48, %s64
      %p66 = scmp.eq.s32.totalorder %s26, 0
      %p67 = por %p65, %p66
      %s68 = ssub.s32 %s27, %s39
      %p69 = scmp.eq.s32.totalorder %s68, 0
      %s71 = sadd.s32 %s70, 1
      %s72 = scalar_select %p69, %s70, %s71
      %p75 = pneg %p69
      %p76 = scmp.eq.s32.totalorder %s20, 3
      %p77 = por %p75, %p76
      %p78 = scmp.ne.s32.totalorder %s70, %s73
      %p79 = scmp.eq.s32.totalorder %s20, 0
      %p80 = por %p78, %p79
      %p81 = scmp.ne.s32.totalorder %s70, %s73
      %p82 = scmp.eq.s32.totalorder %s25, 3
      %p83 = por %p81, %p82
      %p84 = scmp.ne.s32.totalorder %s73, %s74
      %p85 = scmp.eq.s32.totalorder %s25, 0
      %p86 = por %p84, %p85
      %p87 = scmp.ne.s32.totalorder %s73, %s74
      %p88 = scmp.eq.s32.totalorder %s26, 3
      %p89 = por %p87, %p88
      %p91 = scmp.ne.s32.totalorder %s74, %s90
      %p92 = scmp.eq.s32.totalorder %s26, 0
      %p93 = por %p91, %p92
      %s95 = sadd.s32 %s94, 1
      %p98 = scmp.eq.s32.totalorder %s20, 3
      %p99 = scmp.ne.s32.totalorder %s94, %s96
      %p100 = scmp.eq.s32.totalorder %s20, 0
      %p101 = por %p99, %p100
      %p102 = scmp.ne.s32.totalorder %s94, %s96
      %p103 = scmp.eq.s32.totalorder %s25, 3
      %p104 = por %p102, %p103
      %p105 = scmp.ne.s32.totalorder %s96, %s97
      %p106 = scmp.eq.s32.totalorder %s25, 0
      %p107 = por %p105, %p106
      %p108 = scmp.ne.s32.totalorder %s96, %s97
      %p109 = scmp.eq.s32.totalorder %s26, 3
      %p110 = por %p108, %p109
      %p112 = scmp.ne.s32.totalorder %s97, %s111
      %p113 = scmp.eq.s32.totalorder %s26, 0
      %p114 = por %p112, %p113
      %s116 = sadd.s32 %s115, 1
      %p119 = scmp.eq.s32.totalorder %s20, 3
      %p120 = scmp.ne.s32.totalorder %s115, %s117
      %p121 = scmp.eq.s32.totalorder %s20, 0
      %p122 = por %p120, %p121
      %p123 = scmp.ne.s32.totalorder %s115, %s117
      %p124 = scmp.eq.s32.totalorder %s25, 3
      %p125 = por %p123, %p124
      %p126 = scmp.ne.s32.totalorder %s117, %s118
      %p127 = scmp.eq.s32.totalorder %s25, 0
      %p128 = por %p126, %p127
      %p129 = scmp.ne.s32.totalorder %s117, %s118
      %p130 = scmp.eq.s32.totalorder %s26, 3
      %p131 = por %p129, %p130
      %p133 = scmp.ne.s32.totalorder %s118, %s132
      %p134 = scmp.eq.s32.totalorder %s26, 0
      %p135 = por %p133, %p134
      %s137 = sadd.s32 %s136, 1
      %p140 = scmp.eq.s32.totalorder %s20, 3
      %p141 = scmp.ne.s32.totalorder %s136, %s138
      %p142 = scmp.eq.s32.totalorder %s20, 0
      %p143 = por %p141, %p142
      %p144 = scmp.ne.s32.totalorder %s136, %s138
      %p145 = scmp.eq.s32.totalorder %s25, 3
      %p146 = por %p144, %p145
      %p147 = scmp.ne.s32.totalorder %s138, %s139
      %p148 = scmp.eq.s32.totalorder %s25, 0
      %p149 = por %p147, %p148
      %p150 = scmp.ne.s32.totalorder %s138, %s139
      %p151 = scmp.eq.s32.totalorder %s26, 3
      %p152 = por %p150, %p151
      %p154 = scmp.ne.s32.totalorder %s139, %s153
      %p155 = scmp.eq.s32.totalorder %s26, 0
      %p156 = por %p154, %p155
      %s157 = ssub.s32 %s27, %s39
      %s158 = ssub.s32 %s28, %s35
      %s159 = sor.u32 %s157, %s158
      %p160 = scmp.eq.s32.totalorder %s159, 0
      %s162 = sadd.s32 %s161, 1
      %s163 = scalar_select %p160, %s161, %s162
      %p166 = pneg %p160
      %p167 = scmp.eq.s32.totalorder %s20, 3
      %p168 = por %p166, %p167
      %p169 = scmp.ne.s32.totalorder %s161, %s164
      %p170 = scmp.eq.s32.totalorder %s20, 0
      %p171 = por %p169, %p170
      %p172 = scmp.ne.s32.totalorder %s161, %s164
      %p173 = scmp.eq.s32.totalorder %s25, 3
      %p174 = por %p172, %p173
      %p175 = scmp.ne.s32.totalorder %s164, %s165
      %p176 = scmp.eq.s32.totalorder %s25, 0
      %p177 = por %p175, %p176
      %p178 = scmp.ne.s32.totalorder %s164, %s165
      %p179 = scmp.eq.s32.totalorder %s26, 3
      %p180 = por %p178, %p179
      %p182 = scmp.ne.s32.totalorder %s165, %s181
      %p183 = scmp.eq.s32.totalorder %s26, 0
      %p184 = por %p182, %p183
      %s185 = ssub.s32 %s27, %s39
      %s186 = ssub.s32 %s28, %s35
      %s187 = sor.u32 %s185, %s186
      %p188 = scmp.eq.s32.totalorder %s187, 0
      %s190 = sadd.s32 %s189, 1
      %s191 = scalar_select %p188, %s189, %s190
      %p194 = pneg %p188
      %p195 = scmp.eq.s32.totalorder %s20, 3
      %p196 = por %p194, %p195
      %p197 = scmp.ne.s32.totalorder %s189, %s192
      %p198 = scmp.eq.s32.totalorder %s20, 0
      %p199 = por %p197, %p198
      %p200 = scmp.ne.s32.totalorder %s189, %s192
      %p201 = scmp.eq.s32.totalorder %s25, 3
      %p202 = por %p200, %p201
      %p203 = scmp.ne.s32.totalorder %s192, %s193
      %p204 = scmp.eq.s32.totalorder %s25, 0
      %p205 = por %p203, %p204
      %p206 = scmp.ne.s32.totalorder %s192, %s193
      %p207 = scmp.eq.s32.totalorder %s26, 3
      %p208 = por %p206, %p207
      %p210 = scmp.ne.s32.totalorder %s193, %s209
      %p211 = scmp.eq.s32.totalorder %s26, 0
      %p212 = por %p210, %p211
      %s213 = ssub.s32 %s27, %s39
      %s214 = ssub.s32 %s28, %s35
      %s215 = sor.u32 %s213, %s214
      %p216 = scmp.eq.s32.totalorder %s215, 0
      %s218 = sadd.s32 %s217, 1
      %s219 = scalar_select %p216, %s217, %s218
      %p222 = pneg %p216
      %p223 = scmp.eq.s32.totalorder %s20, 3
      %p224 = por %p222, %p223
      %p225 = scmp.ne.s32.totalorder %s217, %s220
      %p226 = scmp.eq.s32.totalorder %s20, 0
      %p227 = por %p225, %p226
      %p228 = scmp.ne.s32.totalorder %s217, %s220
      %p229 = scmp.eq.s32.totalorder %s25, 3
      %p230 = por %p228, %p229
      %p231 = scmp.ne.s32.totalorder %s220, %s221
      %p232 = scmp.eq.s32.totalorder %s25, 0
      %p233 = por %p231, %p232
      %p234 = scmp.ne.s32.totalorder %s220, %s221
      %p235 = scmp.eq.s32.totalorder %s26, 3
      %p236 = por %p234, %p235
      %p238 = scmp.ne.s32.totalorder %s221, %s237
      %p239 = scmp.eq.s32.totalorder %s26, 0
      %p240 = por %p238, %p239
      %p241 = scmp.le.s32.totalorder 1, %s20
      %p242 = scmp.lt.s32.totalorder %s20, 5
      %p243 = pnand %p241, %p242
      %p244 = pneg %p243
      // Predicated region
      $region9: #{tpu_custom_call.1} parent=5 // pred_check
        _
      $region10: #{tpu_custom_call.1} parent=5 // pred_check_branch
        %246 = sbr.rel (%p243) target = $region12
      $region11: #{tpu_custom_call.1} parent=5 // pred_region
        %s247 = ssub.s32 %s20, 1
        // Predicated region
        $region13: #{tpu_custom_call.1} parent=11 // pred_check
          %p248 = pneg %p107
        $region14: #{tpu_custom_call.1} parent=11 // pred_check_branch
          %250 = sbr.rel (%p248) target = $region16
        $region15: #{tpu_custom_call.1} parent=11 // pred_region
          _
        $region16: #{tpu_custom_call.1} parent=11 // pred_fallthru
          _
        // Predicated region
        $region17: #{tpu_custom_call.1} parent=11 // pred_check
          %p251 = pneg %p128
        $region18: #{tpu_custom_call.1} parent=11 // pred_check_branch
          %253 = sbr.rel (%p251) target = $region20
        $region19: #{tpu_custom_call.1} parent=11 // pred_region
          _
        $region20: #{tpu_custom_call.1} parent=11 // pred_fallthru
          _
        // Predicated region
        $region21: #{tpu_custom_call.1} parent=11 // pred_check
          %p254 = pneg %p149
        $region22: #{tpu_custom_call.1} parent=11 // pred_check_branch
          %256 = sbr.rel (%p254) target = $region24
        $region23: #{tpu_custom_call.1} parent=11 // pred_region
          _
        $region24: #{tpu_custom_call.1} parent=11 // pred_fallthru
          _
      $region12: #{tpu_custom_call.1} parent=5 // pred_fallthru
        _
      %p257 = scmp.lt.s32.totalorder %s20, 4
      // Predicated region
      $region25: #{tpu_custom_call.1} parent=5 // pred_check
        %p258 = pneg %p257
      $region26: #{tpu_custom_call.1} parent=5 // pred_check_branch
        %260 = sbr.rel (%p258) target = $region28
      $region27: #{tpu_custom_call.1} parent=5 // pred_region
        // Predicated region
        $region29: #{tpu_custom_call.1} parent=27 // pred_check
          %p261 = pneg %p54
        $region30: #{tpu_custom_call.1} parent=27 // pred_check_branch
          %263 = sbr.rel (%p261) target = $region32
        $region31: #{tpu_custom_call.1} parent=27 // pred_region
          %p264 = scmp.lt.s32.totalorder %s27, 1
          %s265 = scalar_select %p264, %s27, 1
          %p266 = scmp.lt.s32.totalorder %s28, 1
          %s267 = scalar_select %p266, %s28, 1
          %s268 = smul.addr %s265, 2
          %s269 = sadd.s32 %s267, %s268
          %s270 = smul.addr %s269, 8
          %s271 = scalar_lea.vmem %s0, %s270
        $region32: #{tpu_custom_call.1} parent=27 // pred_fallthru
          _
        // Predicated region
        $region33: #{tpu_custom_call.1} parent=27 // pred_check
          %p272 = pneg %p80
        $region34: #{tpu_custom_call.1} parent=27 // pred_check_branch
          %274 = sbr.rel (%p272) target = $region36
        $region35: #{tpu_custom_call.1} parent=27 // pred_region
          %p275 = scmp.lt.s32.totalorder %s27, 1
          %s276 = scalar_select %p275, %s27, 1
          %s277 = smul.addr %s276, 2
          %s278 = smul.addr %s277, 8
          %s279 = scalar_lea.vmem %s1, %s278
        $region36: #{tpu_custom_call.1} parent=27 // pred_fallthru
          _
      $region28: #{tpu_custom_call.1} parent=5 // pred_fallthru
        _
      %p280 = scmp.le.s32.totalorder 1, %s20
      %p281 = scmp.lt.s32.totalorder %s20, 5
      %p282 = pnand %p280, %p281
      %p283 = pneg %p282
      // Predicated region
      $region37: #{tpu_custom_call.1} parent=5 // pred_check
        _
      $region38: #{tpu_custom_call.1} parent=5 // pred_check_branch
        %285 = sbr.rel (%p282) target = $region40
      $region39: #{tpu_custom_call.1} parent=5 // pred_region
        %s286 = ssub.s32 %s20, 1
        %p287 = scmp.lt.s32.totalorder %s29, 1
        %s288 = scalar_select %p287, %s29, 1
        %p289 = scmp.lt.s32.totalorder %s30, 1
        %s290 = scalar_select %p289, %s30, 1
        %s291 = smul.addr %s288, 2
        %s292 = sadd.s32 %s290, %s291
        %s293 = smul.addr %s292, 8
        %s294 = scalar_lea.vmem %s0, %s293
        %p295 = pneg %p60
        %p296 = pneg %p57
        %p297 = scmp.lt.s32.totalorder %s29, 1
        %s298 = scalar_select %p297, %s29, 1
        %s299 = smul.addr %s298, 2
        %s300 = smul.addr %s299, 8
        %s301 = scalar_lea.vmem %s1, %s300
        %p302 = pneg %p86
        %p303 = pneg %p83
        %p304 = pneg %p107
        %p305 = pneg %p104
        %p306 = pneg %p128
        %p307 = pneg %p125
        %p308 = pneg %p149
        %p309 = pneg %p146
        %p310 = pneg %p177
        %p311 = pneg %p174
        %p312 = scmp.lt.s32.totalorder %s29, 1
        %s313 = scalar_select %p312, %s29, 1
        %p314 = scmp.lt.s32.totalorder %s30, 1
        %s315 = scalar_select %p314, %s30, 1
        %s316 = smul.addr %s313, 2
        %s317 = sadd.s32 %s315, %s316
        %s318 = smul.addr %s317, 8
        %s319 = scalar_lea.vmem %s5, %s318
        %p320 = pneg %p205
        %p321 = pneg %p202
        %s322 = sand.u32 %s192, 1
        %s323 = scalar_lea.sflag [#allocation3], %s322
        %s324 = sand.u32 %s192, 1
        %s325 = smul.addr %s324, 8
        %s326 = scalar_lea.vmem [#allocation2], %s325
        %p327 = pneg %p233
        %p328 = pneg %p230
        %s329 = sand.u32 %s220, 1
        %s330 = scalar_lea.sflag [#allocation5], %s329
        %s331 = sand.u32 %s220, 1
        %s332 = smul.addr %s331, 8
        %s333 = scalar_lea.vmem [#allocation4], %s332
        %p334 = scmp.lt.s32.totalorder %s29, 1
        %s335 = scalar_select %p334, %s29, 1
        %p336 = scmp.lt.s32.totalorder %s30, 1
        %s337 = scalar_select %p336, %s30, 1
        %s338 = smul.addr %s335, 2
        %s339 = sadd.s32 %s337, %s338
        %s340 = smul.addr %s339, 8
        %s341 = scalar_lea.vmem %s0, %s340
        %p342 = scmp.lt.s32.totalorder %s29, 1
        %s343 = scalar_select %p342, %s29, 1
        %s344 = smul.addr %s343, 2
        %s345 = smul.addr %s344, 8
        %s346 = scalar_lea.vmem %s1, %s345
        %p347 = scmp.lt.s32.totalorder %s29, 1
        %s348 = scalar_select %p347, %s29, 1
        %p349 = scmp.lt.s32.totalorder %s30, 1
        %s350 = scalar_select %p349, %s30, 1
        %s351 = smul.addr %s348, 2
        %s352 = sadd.s32 %s350, %s351
        %s353 = smul.addr %s352, 8
        %s354 = scalar_lea.vmem %s5, %s353
        %v355 = vld [vmem:[%s341] sm:$0xff]
        %v356 = vld [vmem:[%s346] sm:$0xff]
        %v357 = vld [vmem:[%s346 + $0x8] sm:$0xff]
        %v358 = vld [vmem:[%s2] sm:$0xf]
        %vm359 = vcmask 31744
        %v361 = vsel %vm359, %v355, 0
        %vm363 = vcmask 1043456
        %v365 = vsel %vm363, %v358, 0
        %367 = vmatprep.subr.mxu0 0.0
        %368 = vmatpush1.msra.mxu0 %v365
        %369 = vmatprep.subr.mxu0 0.0
        %370 = vmatpush1.msra.mxu0 0.0
        %371 = vmatprep.subr.mxu0 0.0
        %372 = vmatpush1.msra.mxu0 0.0
        %373 = vmatprep.subr.mxu0 0.0
        %374 = vmatpush1.msra.mxu0 0.0
        %375 = vmatprep.subr.mxu0 0.0
        %376 = vmatpush1.msra.mxu0 0.0
        %377 = vmatprep.subr.mxu0 0.0
        %378 = vmatpush1.msra.mxu0 0.0
        %379 = vmatprep.subr.mxu0 0.0
        %380 = vmatpush1.msra.mxu0 0.0
        %381 = vmatprep.subr.mxu0 0.0
        %382 = vmatpush1.msra.mxu0 0.0
        %383 = vmatprep.subr.mxu0 0.0
        %384 = vmatpush1.msra.mxu0 0.0
        %385 = vmatprep.subr.mxu0 0.0
        %386 = vmatpush1.msra.mxu0 0.0
        %387 = vmatprep.subr.mxu0 0.0
        %388 = vmatpush1.msra.mxu0 0.0
        %389 = vmatprep.subr.mxu0 0.0
        %390 = vmatpush1.msra.mxu0 0.0
        %391 = vmatprep.subr.mxu0 0.0
        %392 = vmatpush1.msra.mxu0 0.0
        %393 = vmatprep.subr.mxu0 0.0
        %394 = vmatpush1.msra.mxu0 0.0
        %395 = vmatprep.subr.mxu0 0.0
        %396 = vmatpush1.msra.mxu0 0.0
        %397 = vmatprep.subr.mxu0 0.0
        %398 = vmatpush1.msra.mxu0 0.0
        %399 = vmatprep.subr.mxu0 0.0
        %400 = vmatpush1.msra.mxu0 0.0
        %401 = vmatprep.subr.mxu0 0.0
        %402 = vmatpush1.msra.mxu0 0.0
        %403 = vmatprep.subr.mxu0 0.0
        %404 = vmatpush1.msra.mxu0 0.0
        %405 = vmatprep.subr.mxu0 0.0
        %406 = vmatpush1.msra.mxu0 0.0
        %407 = vmatprep.subr.mxu0 0.0
        %408 = vmatpush1.msra.mxu0 0.0
        %409 = vmatprep.subr.mxu0 0.0
        %410 = vmatpush1.msra.mxu0 0.0
        %411 = vmatprep.subr.mxu0 0.0
        %412 = vmatpush1.msra.mxu0 0.0
        %413 = vmatprep.subr.mxu0 0.0
        %414 = vmatpush1.msra.mxu0 0.0
        %415 = vmatprep.subr.mxu0 0.0
        %416 = vmatpush1.msra.mxu0 0.0
        %417 = vmatprep.subr.mxu0 0.0
        %418 = vmatpush1.msra.mxu0 0.0
        %419 = vmatprep.subr.mxu0 0.0
        %420 = vmatpush1.msra.mxu0 0.0
        %421 = vmatprep.subr.mxu0 0.0
        %422 = vmatpush1.msra.mxu0 0.0
        %423 = vmatprep.subr.mxu0 0.0
        %424 = vmatpush1.msra.mxu0 0.0
        %425 = vmatprep.subr.mxu0 0.0
        %426 = vmatpush1.msra.mxu0 0.0
        %427 = vmatprep.subr.mxu0 0.0
        %428 = vmatpush1.msra.mxu0 0.0
        %429 = vmatprep.subr.mxu0 0.0
        %430 = vmatpush1.msra.mxu0 0.0
        %431 = vmatprep.mubr.f32.mxu0 0.0
        %432 = vmatmul.mubr.f32.gmra.mrb[0].mxu0 %v361
        %v433 = vpop.f32.mrb[0].mxu0
        %v434 = vadd.f32 0.0, %v433
        %v435 = vpop.f32.mrb[0].mxu0
        %436 = vdwg.mxu0
        %437 = vst [vmem:[%s326] sm:$0xff] %v434
        %v438 = vld [vmem:[%s3] sm:$0xf]
        %v439 = vld [vmem:[%s4] sm:$0x1]
        %v441 = vlaneseq
        %v442 = vshrl.u32 %v441, 7
        %v443 = vsub.s32 0, %v442
        %v444 = vrot.slane %v439, %v443
        %v447 = vsel %vm363, %v438, 0
        %449 = vmatprep.subr.mxu0 0.0
        %450 = vmatpush1.msra.mxu0 %v447
        %451 = vmatprep.subr.mxu0 0.0
        %452 = vmatpush1.msra.mxu0 0.0
        %453 = vmatprep.subr.mxu0 0.0
        %454 = vmatpush1.msra.mxu0 0.0
        %455 = vmatprep.subr.mxu0 0.0
        %456 = vmatpush1.msra.mxu0 0.0
        %457 = vmatprep.subr.mxu0 0.0
        %458 = vmatpush1.msra.mxu0 0.0
        %459 = vmatprep.subr.mxu0 0.0
        %460 = vmatpush1.msra.mxu0 0.0
        %461 = vmatprep.subr.mxu0 0.0
        %462 = vmatpush1.msra.mxu0 0.0
        %463 = vmatprep.subr.mxu0 0.0
        %464 = vmatpush1.msra.mxu0 0.0
        %465 = vmatprep.subr.mxu0 0.0
        %466 = vmatpush1.msra.mxu0 0.0
        %467 = vmatprep.subr.mxu0 0.0
        %468 = vmatpush1.msra.mxu0 0.0
        %469 = vmatprep.subr.mxu0 0.0
        %470 = vmatpush1.msra.mxu0 0.0
        %471 = vmatprep.subr.mxu0 0.0
        %472 = vmatpush1.msra.mxu0 0.0
        %473 = vmatprep.subr.mxu0 0.0
        %474 = vmatpush1.msra.mxu0 0.0
        %475 = vmatprep.subr.mxu0 0.0
        %476 = vmatpush1.msra.mxu0 0.0
        %477 = vmatprep.subr.mxu0 0.0
        %478 = vmatpush1.msra.mxu0 0.0
        %479 = vmatprep.subr.mxu0 0.0
        %480 = vmatpush1.msra.mxu0 0.0
        %481 = vmatprep.subr.mxu0 0.0
        %482 = vmatpush1.msra.mxu0 0.0
        %483 = vmatprep.subr.mxu0 0.0
        %484 = vmatpush1.msra.mxu0 0.0
        %485 = vmatprep.subr.mxu0 0.0
        %486 = vmatpush1.msra.mxu0 0.0
        %487 = vmatprep.subr.mxu0 0.0
        %488 = vmatpush1.msra.mxu0 0.0
        %489 = vmatprep.subr.mxu0 0.0
        %490 = vmatpush1.msra.mxu0 0.0
        %491 = vmatprep.subr.mxu0 0.0
        %492 = vmatpush1.msra.mxu0 0.0
        %493 = vmatprep.subr.mxu0 0.0
        %494 = vmatpush1.msra.mxu0 0.0
        %495 = vmatprep.subr.mxu0 0.0
        %496 = vmatpush1.msra.mxu0 0.0
        %497 = vmatprep.subr.mxu0 0.0
        %498 = vmatpush1.msra.mxu0 0.0
        %499 = vmatprep.subr.mxu0 0.0
        %500 = vmatpush1.msra.mxu0 0.0
        %501 = vmatprep.subr.mxu0 0.0
        %502 = vmatpush1.msra.mxu0 0.0
        %503 = vmatprep.subr.mxu0 0.0
        %504 = vmatpush1.msra.mxu0 0.0
        %505 = vmatprep.subr.mxu0 0.0
        %506 = vmatpush1.msra.mxu0 0.0
        %507 = vmatprep.subr.mxu0 0.0
        %508 = vmatpush1.msra.mxu0 0.0
        %509 = vmatprep.subr.mxu0 0.0
        %510 = vmatpush1.msra.mxu0 0.0
        %511 = vmatprep.subr.mxu0 0.0
        %512 = vmatpush1.msra.mxu0 0.0
        %513 = vmatprep.mubr.f32.mxu0 0.0
        %514 = vmatmul.mubr.f32.gmra.mrb[0].mxu0 %v361
        %v515 = vpop.f32.mrb[0].mxu0
        %v516 = vadd.f32 %v444, %v515
        %v517 = vpop.f32.mrb[0].mxu0
        %518 = vdwg.mxu0
        %519 = vst [vmem:[%s333] sm:$0xff] %v516
        %v521 = vsel %vm359, %v356, 0
        %v524 = vsel %vm359, %v357, 0
        %526 = vmatprep.subr.mxu0 0.0
        %527 = vmatpush1.xpose.msra.mxu0 %v521
        %528 = vmatprep.subr.mxu0 0.0
        %529 = vmatpush1.xpose.msra.mxu0 %v524
        %530 = vmatprep.subr.mxu0 0.0
        %531 = vmatpush1.xpose.msra.mxu0 0.0
        %532 = vmatprep.subr.mxu0 0.0
        %533 = vmatpush1.xpose.msra.mxu0 0.0
        %534 = vmatprep.subr.mxu0 0.0
        %535 = vmatpush1.xpose.msra.mxu0 0.0
        %536 = vmatprep.subr.mxu0 0.0
        %537 = vmatpush1.xpose.msra.mxu0 0.0
        %538 = vmatprep.subr.mxu0 0.0
        %539 = vmatpush1.xpose.msra.mxu0 0.0
        %540 = vmatprep.subr.mxu0 0.0
        %541 = vmatpush1.xpose.msra.mxu0 0.0
        %542 = vmatprep.subr.mxu0 0.0
        %543 = vmatpush1.xpose.msra.mxu0 0.0
        %544 = vmatprep.subr.mxu0 0.0
        %545 = vmatpush1.xpose.msra.mxu0 0.0
        %546 = vmatprep.subr.mxu0 0.0
        %547 = vmatpush1.xpose.msra.mxu0 0.0
        %548 = vmatprep.subr.mxu0 0.0
        %549 = vmatpush1.xpose.msra.mxu0 0.0
        %550 = vmatprep.subr.mxu0 0.0
        %551 = vmatpush1.xpose.msra.mxu0 0.0
        %552 = vmatprep.subr.mxu0 0.0
        %553 = vmatpush1.xpose.msra.mxu0 0.0
        %554 = vmatprep.subr.mxu0 0.0
        %555 = vmatpush1.xpose.msra.mxu0 0.0
        %556 = vmatprep.subr.mxu0 0.0
        %557 = vmatpush1.xpose.msra.mxu0 0.0
        %558 = vmatprep.subr.mxu0 0.0
        %559 = vmatpush1.xpose.msra.mxu0 0.0
        %560 = vmatprep.subr.mxu0 0.0
        %561 = vmatpush1.xpose.msra.mxu0 0.0
        %562 = vmatprep.subr.mxu0 0.0
        %563 = vmatpush1.xpose.msra.mxu0 0.0
        %564 = vmatprep.subr.mxu0 0.0
        %565 = vmatpush1.xpose.msra.mxu0 0.0
        %566 = vmatprep.subr.mxu0 0.0
        %567 = vmatpush1.xpose.msra.mxu0 0.0
        %568 = vmatprep.subr.mxu0 0.0
        %569 = vmatpush1.xpose.msra.mxu0 0.0
        %570 = vmatprep.subr.mxu0 0.0
        %571 = vmatpush1.xpose.msra.mxu0 0.0
        %572 = vmatprep.subr.mxu0 0.0
        %573 = vmatpush1.xpose.msra.mxu0 0.0
        %574 = vmatprep.subr.mxu0 0.0
        %575 = vmatpush1.xpose.msra.mxu0 0.0
        %576 = vmatprep.subr.mxu0 0.0
        %577 = vmatpush1.xpose.msra.mxu0 0.0
        %578 = vmatprep.subr.mxu0 0.0
        %579 = vmatpush1.xpose.msra.mxu0 0.0
        %580 = vmatprep.subr.mxu0 0.0
        %581 = vmatpush1.xpose.msra.mxu0 0.0
        %582 = vmatprep.subr.mxu0 0.0
        %583 = vmatpush1.xpose.msra.mxu0 0.0
        %584 = vmatprep.subr.mxu0 0.0
        %585 = vmatpush1.xpose.msra.mxu0 0.0
        %586 = vmatprep.subr.mxu0 0.0
        %587 = vmatpush1.xpose.msra.mxu0 0.0
        %588 = vmatprep.subr.mxu0 0.0
        %589 = vmatpush1.xpose.msra.mxu0 0.0
        %590 = vmatprep.mubr.f32.mxu0 0.0
        %591 = vmatmul.mubr.f32.gmra.mrb[0].mxu0 %v361
        %v592 = vpop.f32.mrb[0].mxu0
        %v593 = vadd.f32 0.0, %v592
        %v594 = vpop.f32.mrb[0].mxu0
        %595 = vdwg.mxu0
        %v596 = vmul.f32 %v355, %v355
        %v597 = vsel %vm359, %v596, 0.0
        %598 = vadd.xlane.f32.xlu0 %v597
        %v599 = vpop.xlane.xlu0 %598
        %v600 = vmul.f32 %v356, %v356
        %v601 = vmul.f32 %v357, %v357
        %v602 = vsel %vm359, %v600, 0.0
        %603 = vadd.xlane.f32.xlu0 %v602
        %v604 = vpop.xlane.xlu0 %603
        %v605 = vsel %vm359, %v601, 0.0
        %606 = vadd.xlane.f32.xlu0 %v605
        %v607 = vpop.xlane.xlu0 %606
        %v608 = vmul.f32 %v593, 2.0
        %v609 = vsub.f32 %v608, %v599
        %v612 = vlaneseq
        %v613 = vand.u32 %v612, 127
        %v614 = vlaneseq
        %v615 = vshrl.u32 %v614, 7
        %v616 = vsub.s32 %v613, %v615
        %v617 = vrot.slane %v604, %v616
        %v618 = vadd.s32 %v613, 4294967288
        %v619 = vlaneseq
        %v620 = vshrl.u32 %v619, 7
        %v621 = vsub.s32 %v618, %v620
        %v622 = vrot.slane %v607, %v621
        %vm623 = vcmask 130112
        %v624 = vsel %vm623, %v622, %v617
        %vm625 = vcmask 1042434
        %v626 = vsel %vm625, %v624, %v624
        %vm627 = vcmask 1043459
        %v628 = vsel %vm627, %v624, %v626
        %vm629 = vcmask 1044484
        %v630 = vsel %vm629, %v624, %v628
        %vm631 = vcmask 1045509
        %v632 = vsel %vm631, %v624, %v630
        %vm633 = vcmask 1046534
        %v634 = vsel %vm633, %v624, %v632
        %vm635 = vcmask 1047559
        %v636 = vsel %vm635, %v624, %v634
        %v638 = vsub.f32 %v609, %v636
        %vm639 = vcmask 130048
        %v640 = vsel %vm639, %v638, -inf
        %641 = vmax.xlane.f32.xlu0 %v640
        %v642 = vpop.xlane.xlu0 %641
        %vm643 = vcmp.eq.f32.partialorder %v638, %v642
        %v644 = vsel %vm643, %v613, 16
        %v645 = vsel %vm639, %v644, 2147483647
        %v646 = vand.u32 %v645, 65535
        %v647 = vshra.s32 %v645, 16
        %v648 = vcvt.s32.f32 %v646
        %v649 = vcvt.s32.f32 %v647
        %650 = vmin.xlane.f32.xlu0 %v649
        %v651 = vpop.xlane.xlu0 %650
        %vm652 = vcmp.eq.f32.partialorder %v649, %v651
        %v653 = vsel %vm652, %v648, inf
        %654 = vmin.xlane.f32.xlu0 %v653
        %v655 = vpop.xlane.xlu0 %654
        %v656 = vcvt.f32.s32 %v655
        %v657 = vcvt.f32.s32 %v651
        %v658 = vshll.u32 %v657, 16
        %v659 = vadd.s32 %v658, %v656
        %vm660 = vcmp.eq.s32.totalorder %v613, %v659
        %v661 = vsel %vm660, -inf, %v638
        %v662 = vsel %vm639, %v661, -inf
        %663 = vmax.xlane.f32.xlu0 %v662
        %v664 = vpop.xlane.xlu0 %663
        %vm665 = vcmp.eq.f32.partialorder %v661, %v664
        %v666 = vsel %vm665, %v613, 16
        %v667 = vsel %vm639, %v666, 2147483647
        %v668 = vand.u32 %v667, 65535
        %v669 = vshra.s32 %v667, 16
        %v670 = vcvt.s32.f32 %v668
        %v671 = vcvt.s32.f32 %v669
        %672 = vmin.xlane.f32.xlu0 %v671
        %v673 = vpop.xlane.xlu0 %672
        %vm674 = vcmp.eq.f32.partialorder %v671, %v673
        %v675 = vsel %vm674, %v670, inf
        %676 = vmin.xlane.f32.xlu0 %v675
        %v677 = vpop.xlane.xlu0 %676
        %v678 = vcvt.f32.s32 %v677
        %v679 = vcvt.f32.s32 %v673
        %v680 = vshll.u32 %v679, 16
        %v681 = vadd.s32 %v680, %v678
        %vm682 = vcmp.eq.s32.totalorder %v613, %v681
        %v683 = vsel %vm682, -inf, %v661
        %v684 = vsel %vm639, %v683, -inf
        %685 = vmax.xlane.f32.xlu0 %v684
        %v686 = vpop.xlane.xlu0 %685
        %vm687 = vcmp.eq.f32.partialorder %v683, %v686
        %v688 = vsel %vm687, %v613, 16
        %v689 = vsel %vm639, %v688, 2147483647
        %v690 = vand.u32 %v689, 65535
        %v691 = vshra.s32 %v689, 16
        %v692 = vcvt.s32.f32 %v690
        %v693 = vcvt.s32.f32 %v691
        %694 = vmin.xlane.f32.xlu0 %v693
        %v695 = vpop.xlane.xlu0 %694
        %vm696 = vcmp.eq.f32.partialorder %v693, %v695
        %v697 = vsel %vm696, %v692, inf
        %698 = vmin.xlane.f32.xlu0 %v697
        %v699 = vpop.xlane.xlu0 %698
        %v700 = vcvt.f32.s32 %v699
        %v701 = vcvt.f32.s32 %v695
        %v702 = vshll.u32 %v701, 16
        %v703 = vadd.s32 %v702, %v700
        %vm704 = vcmp.eq.s32.totalorder %v613, %v703
        %v705 = vsel %vm704, -inf, %v683
        %v706 = vsel %vm639, %v705, -inf
        %707 = vmax.xlane.f32.xlu0 %v706
        %v708 = vpop.xlane.xlu0 %707
        %vm709 = vcmp.eq.f32.partialorder %v705, %v708
        %v710 = vsel %vm709, %v613, 16
        %v711 = vsel %vm639, %v710, 2147483647
        %v712 = vand.u32 %v711, 65535
        %v713 = vshra.s32 %v711, 16
        %v714 = vcvt.s32.f32 %v712
        %v715 = vcvt.s32.f32 %v713
        %716 = vmin.xlane.f32.xlu0 %v715
        %v717 = vpop.xlane.xlu0 %716
        %vm718 = vcmp.eq.f32.partialorder %v715, %v717
        %v719 = vsel %vm718, %v714, inf
        %720 = vmin.xlane.f32.xlu0 %v719
        %v721 = vpop.xlane.xlu0 %720
        %v722 = vcvt.f32.s32 %v721
        %v723 = vcvt.f32.s32 %v717
        %v724 = vshll.u32 %v723, 16
        %v725 = vadd.s32 %v724, %v722
        %vm726 = vcmask 7168
        %v727 = vsel %vm726, %v659, %v681
        %vm728 = vcmask 15360
        %v729 = vsel %vm728, %v727, %v703
        %vm730 = vcmask 23552
        %v731 = vsel %vm730, %v729, %v725
        %732 = vst.msk [vmem:[%s354] sm:$0xff] %vm359, %v731
        %p733 = scmp.lt.s32.totalorder %s29, 1
        %s734 = scalar_select %p733, %s29, 1
        %p735 = scmp.lt.s32.totalorder %s30, 1
        %s736 = scalar_select %p735, %s30, 1
        %s737 = smul.addr %s734, 2
        %s738 = sadd.s32 %s736, %s737
        %s739 = smul.addr %s738, 8
        %s740 = scalar_lea.vmem %s5, %s739
        %s741 = sand.u32 %s192, 1
        %s742 = scalar_lea.sflag [#allocation3], %s741
        %s743 = sand.u32 %s192, 1
        %s744 = smul.addr %s743, 8
        %s745 = scalar_lea.vmem [#allocation2], %s744
        %s746 = sand.u32 %s220, 1
        %s747 = scalar_lea.sflag [#allocation5], %s746
        %s748 = sand.u32 %s220, 1
        %s749 = smul.addr %s748, 8
        %s750 = scalar_lea.vmem [#allocation4], %s749
        // Predicated region
        $region41: #{tpu_custom_call.1} parent=39 // pred_check
          %p751 = pneg %p174
        $region42: #{tpu_custom_call.1} parent=39 // pred_check_branch
          %753 = sbr.rel (%p751) target = $region44
        $region43: #{tpu_custom_call.1} parent=39 // pred_region
          _
        $region44: #{tpu_custom_call.1} parent=39 // pred_fallthru
          _
        // Predicated region
        $region45: #{tpu_custom_call.1} parent=39 // pred_check
          %p754 = pneg %p202
        $region46: #{tpu_custom_call.1} parent=39 // pred_check_branch
          %756 = sbr.rel (%p754) target = $region48
        $region47: #{tpu_custom_call.1} parent=39 // pred_region
          %s758 = ssub.s32 128, 128
          %759 = vsyncadd %s742, %s758
          %s760 = smul.addr %s29, 2
          %s761 = sadd.s32 %s30, %s760
          %s762 = smul.addr %s761, 128
          %s763 = scalar_lea.hbm %s6, %s762
          %s765 = sshll.u32 %s745, 4
          %s766 = int_to_ptr.vmem [resolvable:$true] %s765
          %768 = dma.vmem_to_hbm [thread:$0]  %s766, 128, %s763, %s742
        $region48: #{tpu_custom_call.1} parent=39 // pred_fallthru
          _
        // Predicated region
        $region49: #{tpu_custom_call.1} parent=39 // pred_check
          %p769 = pneg %p230
        $region50: #{tpu_custom_call.1} parent=39 // pred_check_branch
          %771 = sbr.rel (%p769) target = $region52
        $region51: #{tpu_custom_call.1} parent=39 // pred_region
          %s773 = ssub.s32 128, 128
          %774 = vsyncadd %s747, %s773
          %s775 = smul.addr %s29, 2
          %s776 = sadd.s32 %s30, %s775
          %s777 = smul.addr %s776, 128
          %s778 = scalar_lea.hbm %s7, %s777
          %s780 = sshll.u32 %s750, 4
          %s781 = int_to_ptr.vmem [resolvable:$true] %s780
          %783 = dma.vmem_to_hbm [thread:$0]  %s781, 128, %s778, %s747
        $region52: #{tpu_custom_call.1} parent=39 // pred_fallthru
          _
      $region40: #{tpu_custom_call.1} parent=5 // pred_fallthru
        _
      %p784 = scmp.le.s32.totalorder 2, %s20
      // Predicated region
      $region53: #{tpu_custom_call.1} parent=5 // pred_check
        %p785 = pneg %p784
      $region54: #{tpu_custom_call.1} parent=5 // pred_check_branch
        %787 = sbr.rel (%p785) target = $region56
      $region55: #{tpu_custom_call.1} parent=5 // pred_region
        %s788 = ssub.s32 %s20, 2
        // Predicated region
        $region57: #{tpu_custom_call.1} parent=55 // pred_check
          %p789 = pneg %p180
        $region58: #{tpu_custom_call.1} parent=55 // pred_check_branch
          %791 = sbr.rel (%p789) target = $region60
        $region59: #{tpu_custom_call.1} parent=55 // pred_region
          %p792 = scmp.lt.s32.totalorder %s31, 1
          %s793 = scalar_select %p792, %s31, 1
          %p794 = scmp.lt.s32.totalorder %s32, 1
          %s795 = scalar_select %p794, %s32, 1
          %s796 = smul.addr %s793, 2
          %s797 = sadd.s32 %s795, %s796
          %s798 = smul.addr %s797, 8
          %s799 = scalar_lea.vmem %s5, %s798
        $region60: #{tpu_custom_call.1} parent=55 // pred_fallthru
          _
        // Predicated region
        $region61: #{tpu_custom_call.1} parent=55 // pred_check
          %p800 = pneg %p208
        $region62: #{tpu_custom_call.1} parent=55 // pred_check_branch
          %802 = sbr.rel (%p800) target = $region64
        $region63: #{tpu_custom_call.1} parent=55 // pred_region
          %s803 = sand.u32 %s193, 1
          %s804 = scalar_lea.sflag [#allocation3], %s803
          %s805 = sand.u32 %s193, 1
          %s806 = smul.addr %s805, 8
          %s807 = scalar_lea.vmem [#allocation2], %s806
          %808 = dma.done %s804, 128
        $region64: #{tpu_custom_call.1} parent=55 // pred_fallthru
          _
        // Predicated region
        $region65: #{tpu_custom_call.1} parent=55 // pred_check
          %p809 = pneg %p236
        $region66: #{tpu_custom_call.1} parent=55 // pred_check_branch
          %811 = sbr.rel (%p809) target = $region68
        $region67: #{tpu_custom_call.1} parent=55 // pred_region
          %s812 = sand.u32 %s221, 1
          %s813 = scalar_lea.sflag [#allocation5], %s812
          %s814 = sand.u32 %s221, 1
          %s815 = smul.addr %s814, 8
          %s816 = scalar_lea.vmem [#allocation4], %s815
          %817 = dma.done %s813, 128
        $region68: #{tpu_custom_call.1} parent=55 // pred_fallthru
          _
      $region56: #{tpu_custom_call.1} parent=5 // pred_fallthru
        _
    $region6: #{tpu_custom_call.1} parent=1 // loop_footer
      %s24 = sadd.s32 1, %s20
    $region7: #{tpu_custom_call.1} parent=1 // loop_footer_branch
      %19 = sbr.rel target = $region3
    $region8: #{tpu_custom_call.1} parent=1 // loop_exit
      _
    %818 = vsyncpa [#allocation3], 1
    %s819 = scalar_lea.sflag [#allocation3], 1
    %820 = vsyncpa %s819, 1
    %821 = vsyncpa [#allocation5], 1
    %s822 = scalar_lea.sflag [#allocation5], 1
    %823 = vsyncpa %s822, 1

</llo_original>
